<compile_context>
chip_gen: v5e
topology: v5e:2x2
jax: 0.10.0
libtpu: 0.0.40
codegen_flags: <defaults>
</compile_context>

<pallas_src>
import functools

import jax
import jax.numpy as jnp
from jax.experimental import pallas as pl
from jax.experimental.pallas import tpu as pltpu


# ----------------------------------------------------------------------------
# Pallas kernel: pool both inputs over S + classifier + log-softmax for a
# (TB, S, D) batch tile per grid step.
# ----------------------------------------------------------------------------
def plbase_kernel(x1_ref, x2_ref,
                  w1a_ref, w1b_ref, b1_ref,
                  w2_ref, b2_ref,
                  w3_ref, b3_ref,
                  out_ref, *, op, seq_len):
    # Upcast bf16 activations to f32 right after load (v5e has no bf16 VPU);
    # pooling and all elementwise math stay in f32.
    x1 = x1_ref[...].astype(jnp.float32)          # (TB, S, D)
    x2 = x2_ref[...].astype(jnp.float32)

    # Sequence pooling (sublane-axis reduce on the XLU).
    if op == 'max':
        h1 = jnp.max(x1, axis=1)                  # (TB, D)
        h2 = jnp.max(x2, axis=1)
    elif op == 'avg':
        h1 = jnp.sum(x1, axis=1) * (1.0 / seq_len)
        h2 = jnp.sum(x2, axis=1) * (1.0 / seq_len)
    else:  # 'sum'
        h1 = jnp.sum(x1, axis=1)
        h2 = jnp.sum(x2, axis=1)

    # bf16 MXU operands, f32 accumulation.  (For op='sum'/'avg' over very long
    # sequences the bf16 cast of large pooled magnitudes can deviate slightly
    # from the f32 PyTorch reference; keep f32 operands there if bit-closeness
    # matters.)
    h1b = h1.astype(jnp.bfloat16)
    h2b = h2.astype(jnp.bfloat16)

    # Linear(2D -> D): split weight avoids a lane-axis concat of [h1, h2].
    a1 = (jnp.dot(h1b, w1a_ref[...], preferred_element_type=jnp.float32)
          + jnp.dot(h2b, w1b_ref[...], preferred_element_type=jnp.float32)
          + b1_ref[...])
    a1 = jnp.maximum(a1, 0.0)

    # Linear(D -> D) + ReLU
    a2 = jnp.dot(a1.astype(jnp.bfloat16), w2_ref[...],
                 preferred_element_type=jnp.float32) + b2_ref[...]
    a2 = jnp.maximum(a2, 0.0)

    # Linear(D -> C_pad); padded classes have zero weights and -1e30 bias so
    # they contribute exp(.)==0 to the softmax denominator.
    logits = jnp.dot(a2.astype(jnp.bfloat16), w3_ref[...],
                     preferred_element_type=jnp.float32) + b3_ref[...]

    # LogSoftmax(dim=-1) in f32.
    m = jnp.max(logits, axis=-1, keepdims=True)
    z = logits - m
    lse = jnp.log(jnp.sum(jnp.exp(z), axis=-1, keepdims=True))
    out_ref[...] = (z - lse).astype(out_ref.dtype)   # dense (TB, 128) store


# ----------------------------------------------------------------------------
# Wrapper: bf16 embedding gather (plain JAX) + single fused pallas_call
# ----------------------------------------------------------------------------
def plbase_forward(ids1, ids2, params, *, op='max',
                   tb_cap=256, vmem_budget_bytes=16 << 20):
    """ids1, ids2: (B, S) int32 token ids (0 = padding). Returns (B, C) log-probs."""
    # Gather in bf16: halves the HBM write of the intermediate and the kernel
    # input DMA bytes (padding row 0 of the table is zero, as in the module).
    emb_bf16 = params['emb'].astype(jnp.bfloat16)           # (V, D)
    x1 = emb_bf16[ids1]                                     # (B, S, D) bf16
    x2 = emb_bf16[ids2]
    B, S, D = x1.shape
    C = params['b3'].shape[-1]

    # Pad classes to a dense 128-lane output block (sliced back below).
    C_pad = max(128, -(-C // 128) * 128)
    w3p = jnp.zeros((D, C_pad), jnp.bfloat16).at[:, :C].set(
        params['w3'].astype(jnp.bfloat16))
    b3p = jnp.full((1, C_pad), -1e30, jnp.float32).at[:, :C].set(params['b3'])

    # Weights to bf16 (MXU path); biases stay f32.  Split W1 into its halves.
    w1a = params['w1'][:D, :].astype(jnp.bfloat16)          # (D, D)
    w1b = params['w1'][D:, :].astype(jnp.bfloat16)          # (D, D)
    w2 = params['w2'].astype(jnp.bfloat16)                  # (D, D)
    b1, b2 = params['b1'], params['b2']                     # (1, D), (1, D)

    # Batch tile: 2 inputs x 2 pipeline buffers x (TB, S, D) bf16 must fit the
    # VMEM budget; cap at tb_cap.  Multiple parallel steps shard over both v7x
    # TensorCores; for tiny B this collapses to a single grid step.
    per_row = 2 * 2 * S * D * 2
    tb = min(tb_cap, max(8, vmem_budget_bytes // max(per_row, 1)))
    tb = max(8, (tb // 8) * 8)
    if B <= tb:
        TB, B_pad = B, B
    else:
        TB = tb
        B_pad = -(-B // TB) * TB
    if B_pad != B:
        pad = ((0, B_pad - B), (0, 0), (0, 0))
        x1 = jnp.pad(x1, pad)
        x2 = jnp.pad(x2, pad)
    nb = B_pad // TB

    full = lambda arr: pl.BlockSpec(arr.shape, lambda b: (0,) * arr.ndim)
    in_specs = [
        pl.BlockSpec((TB, S, D), lambda b: (b, 0, 0)),      # x1 batch tile
        pl.BlockSpec((TB, S, D), lambda b: (b, 0, 0)),      # x2 batch tile
        full(w1a), full(w1b), full(b1),
        full(w2), full(b2),
        full(w3p), full(b3p),
    ]
    out_specs = pl.BlockSpec((TB, C_pad), lambda b: (b, 0))
    out_shape = jax.ShapeDtypeStruct((B_pad, C_pad), jnp.float32)

    cost = pl.CostEstimate(
        flops=int(2 * B_pad * D * (2 * D + D + C_pad) + 4 * B_pad * S * D),
        transcendentals=int(B_pad * (C_pad + 1)),
        bytes_accessed=int(2 * B_pad * S * D * 2                 # x1, x2 (bf16)
                           + (3 * D * D + D * C_pad) * 2         # weights (bf16)
                           + (2 * D + C_pad) * 4                 # biases (f32)
                           + B_pad * C_pad * 4),                 # output (f32)
    )

    kernel = functools.partial(plbase_kernel, op=op, seq_len=S)
    out = pl.pallas_call(
        kernel,
        out_shape=out_shape,
        grid_spec=pltpu.PrefetchScalarGridSpec(
            num_scalar_prefetch=0,
            grid=(nb,),
            in_specs=in_specs,
            out_specs=out_specs,
        ),
        compiler_params=pltpu.CompilerParams(
            dimension_semantics=("parallel",)),
        cost_estimate=cost,
    )(x1, x2, w1a, w1b, b1, w2, b2, w3p, b3p)
    return out[:B, :C]


# ----------------------------------------------------------------------------
# Pure-JAX reference (mirrors the PyTorch module, f32 end-to-end)
# ----------------------------------------------------------------------------
def plbase_reference(ids1, ids2, params, *, op='max'):
    emb = params['emb']

    def fw(ids):
        x = emb[ids]                                         # (B, S, D)
        if op == 'max':
            return x.max(axis=1)
        elif op == 'avg':
            return x.mean(axis=1)
        return x.sum(axis=1)

    h = jnp.concatenate([fw(ids1), fw(ids2)], axis=-1)       # (B, 2D)
    a1 = jnp.maximum(h @ params['w1'] + params['b1'], 0.0)
    a2 = jnp.maximum(a1 @ params['w2'] + params['b2'], 0.0)
    logits = a2 @ params['w3'] + params['b3']
    return jax.nn.log_softmax(logits, axis=-1)


# ----------------------------------------------------------------------------
# Deterministic parameter construction (matches PLBase module structure)
# ----------------------------------------------------------------------------
def init_params(key, *, vocab_size, input_size, n_classes):
    D = input_size
    k_emb, k1, k2, k3, kb1, kb2, kb3 = jax.random.split(key, 7)

    emb = 0.02 * jax.random.normal(k_emb, (vocab_size, D), jnp.float32)
    emb = emb.at[0].set(0.0)                                 # padding_idx=0

    return dict(
        emb=emb,
        w1=0.05 * jax.random.normal(k1, (2 * D, D), jnp.float32),
        b1=0.01 * jax.random.normal(kb1, (1, D), jnp.float32),
        w2=0.05 * jax.random.normal(k2, (D, D), jnp.float32),
        b2=0.01 * jax.random.normal(kb2, (1, D), jnp.float32),
        w3=0.05 * jax.random.normal(k3, (D, n_classes), jnp.float32),
        b3=0.01 * jax.random.normal(kb3, (1, n_classes), jnp.float32),
    )


if __name__ == "__main__":
    # Small config consistent with PLBase(input_size, vocab_size, n_classes,
    # num_layers=0, op='max')
    vocab_size, input_size, n_classes = 50, 32, 8
    B, S = 2, 16
    op = 'max'

    key = jax.random.PRNGKey(0)
    pkey, i1key, i2key = jax.random.split(key, 3)
    params = init_params(pkey, vocab_size=vocab_size,
                         input_size=input_size, n_classes=n_classes)

    # token ids in [1, vocab); zero out some tails as padding
    ids1 = jax.random.randint(i1key, (B, S), 1, vocab_size, dtype=jnp.int32)
    ids2 = jax.random.randint(i2key, (B, S), 1, vocab_size, dtype=jnp.int32)
    ids1 = ids1.at[0, -3:].set(0)
    ids2 = ids2.at[1, -5:].set(0)

    out = plbase_forward(ids1, ids2, params, op=op)
    out = jax.block_until_ready(out)

    assert out.shape == (B, n_classes)
    assert bool(jnp.all(jnp.isfinite(out)))
    # rows of exp(log_softmax) must sum to 1
    assert bool(jnp.all(jnp.abs(jnp.exp(out).sum(-1) - 1.0) < 1e-3))
    # match the f32 pure-JAX reference (bf16 MXU tolerance)
    ref = plbase_reference(ids1, ids2, params, op=op)
    max_err = float(jnp.max(jnp.abs(out - ref)))
    assert max_err < 2e-2, f"max abs error vs reference: {max_err}"
    print("KERNEL_OK")
</pallas_src>

<mosaic_0001>
module attributes {stable_mosaic.version = 11 : i64} {
  func.func @plbase_kernel(%arg0: i32, %arg1: memref<2x16x32xbf16, #tpu.memory_space<vmem>>, %arg2: memref<2x16x32xbf16, #tpu.memory_space<vmem>>, %arg3: memref<32x32xbf16, #tpu.memory_space<vmem>>, %arg4: memref<32x32xbf16, #tpu.memory_space<vmem>>, %arg5: memref<1x32xf32, #tpu.memory_space<vmem>>, %arg6: memref<32x32xbf16, #tpu.memory_space<vmem>>, %arg7: memref<1x32xf32, #tpu.memory_space<vmem>>, %arg8: memref<32x128xbf16, #tpu.memory_space<vmem>>, %arg9: memref<1x128xf32, #tpu.memory_space<vmem>>, %arg10: memref<2x128xf32, #tpu.memory_space<vmem>>) attributes {dimension_semantics = [#tpu.dimension_semantics<parallel>], iteration_bounds = array<i64: 1>, scalar_prefetch = 0 : i64, scratch_operands = 0 : i64, tpu.core_type = #tpu.core_type<tc>, window_params = [{transform_indices = @transform_0, window_bounds = array<i64: 2, 16, 32>}, {transform_indices = @transform_1, window_bounds = array<i64: 2, 16, 32>}, {pipeline_mode = #tpu.pipeline_mode<synchronous>, transform_indices = @transform_2, window_bounds = array<i64: 32, 32>}, {pipeline_mode = #tpu.pipeline_mode<synchronous>, transform_indices = @transform_3, window_bounds = array<i64: 32, 32>}, {pipeline_mode = #tpu.pipeline_mode<synchronous>, transform_indices = @transform_4, window_bounds = array<i64: 1, 32>}, {pipeline_mode = #tpu.pipeline_mode<synchronous>, transform_indices = @transform_5, window_bounds = array<i64: 32, 32>}, {pipeline_mode = #tpu.pipeline_mode<synchronous>, transform_indices = @transform_6, window_bounds = array<i64: 1, 32>}, {pipeline_mode = #tpu.pipeline_mode<synchronous>, transform_indices = @transform_7, window_bounds = array<i64: 32, 128>}, {pipeline_mode = #tpu.pipeline_mode<synchronous>, transform_indices = @transform_8, window_bounds = array<i64: 1, 128>}, {transform_indices = @transform_9, window_bounds = array<i64: 2, 128>}]} {
    %c0 = arith.constant 0 : index
    %c0_0 = arith.constant 0 : index
    %c0_1 = arith.constant 0 : index
    %0 = vector.load %arg1[%c0, %c0_0, %c0_1] : memref<2x16x32xbf16, #tpu.memory_space<vmem>>, vector<2x16x32xbf16>
    %1 = arith.extf %0 : vector<2x16x32xbf16> to vector<2x16x32xf32>
    %c0_2 = arith.constant 0 : index
    %c0_3 = arith.constant 0 : index
    %c0_4 = arith.constant 0 : index
    %2 = vector.load %arg2[%c0_2, %c0_3, %c0_4] : memref<2x16x32xbf16, #tpu.memory_space<vmem>>, vector<2x16x32xbf16>
    %3 = arith.extf %2 : vector<2x16x32xbf16> to vector<2x16x32xf32>
    %cst = arith.constant dense<0xFF800000> : vector<2x32xf32>
    %4 = vector.multi_reduction <maximumf>, %1, %cst [1] : vector<2x16x32xf32> to vector<2x32xf32>
    %cst_5 = arith.constant dense<0xFF800000> : vector<2x32xf32>
    %5 = vector.multi_reduction <maximumf>, %3, %cst_5 [1] : vector<2x16x32xf32> to vector<2x32xf32>
    %6 = arith.truncf %4 : vector<2x32xf32> to vector<2x32xbf16>
    %7 = arith.truncf %5 : vector<2x32xf32> to vector<2x32xbf16>
    %c0_6 = arith.constant 0 : index
    %c0_7 = arith.constant 0 : index
    %8 = vector.load %arg3[%c0_6, %c0_7] : memref<32x32xbf16, #tpu.memory_space<vmem>>, vector<32x32xbf16>
    %cst_8 = arith.constant dense<0.000000e+00> : vector<2x32xf32>
    %9 = tpu.matmul %6, %8, %cst_8 {dimension_numbers = #tpu.dot_dimension_numbers<[1], [0], [0], [1], [0, 0, 1, 1], [], []>} : vector<2x32xbf16>, vector<32x32xbf16>, vector<2x32xf32> -> vector<2x32xf32>
    %c0_9 = arith.constant 0 : index
    %c0_10 = arith.constant 0 : index
    %10 = vector.load %arg4[%c0_9, %c0_10] : memref<32x32xbf16, #tpu.memory_space<vmem>>, vector<32x32xbf16>
    %cst_11 = arith.constant dense<0.000000e+00> : vector<2x32xf32>
    %11 = tpu.matmul %7, %10, %cst_11 {dimension_numbers = #tpu.dot_dimension_numbers<[1], [0], [0], [1], [0, 0, 1, 1], [], []>} : vector<2x32xbf16>, vector<32x32xbf16>, vector<2x32xf32> -> vector<2x32xf32>
    %12 = arith.addf %9, %11 : vector<2x32xf32>
    %c0_12 = arith.constant 0 : index
    %c0_13 = arith.constant 0 : index
    %13 = vector.load %arg5[%c0_12, %c0_13] : memref<1x32xf32, #tpu.memory_space<vmem>>, vector<1x32xf32>
    %14 = vector.broadcast %13 : vector<1x32xf32> to vector<2x32xf32>
    %15 = arith.addf %12, %14 : vector<2x32xf32>
    %cst_14 = arith.constant 0.000000e+00 : f32
    %16 = vector.broadcast %cst_14 : f32 to vector<2x32xf32>
    %17 = arith.maximumf %15, %16 : vector<2x32xf32>
    %18 = arith.truncf %17 : vector<2x32xf32> to vector<2x32xbf16>
    %c0_15 = arith.constant 0 : index
    %c0_16 = arith.constant 0 : index
    %19 = vector.load %arg6[%c0_15, %c0_16] : memref<32x32xbf16, #tpu.memory_space<vmem>>, vector<32x32xbf16>
    %cst_17 = arith.constant dense<0.000000e+00> : vector<2x32xf32>
    %20 = tpu.matmul %18, %19, %cst_17 {dimension_numbers = #tpu.dot_dimension_numbers<[1], [0], [0], [1], [0, 0, 1, 1], [], []>} : vector<2x32xbf16>, vector<32x32xbf16>, vector<2x32xf32> -> vector<2x32xf32>
    %c0_18 = arith.constant 0 : index
    %c0_19 = arith.constant 0 : index
    %21 = vector.load %arg7[%c0_18, %c0_19] : memref<1x32xf32, #tpu.memory_space<vmem>>, vector<1x32xf32>
    %22 = vector.broadcast %21 : vector<1x32xf32> to vector<2x32xf32>
    %23 = arith.addf %20, %22 : vector<2x32xf32>
    %cst_20 = arith.constant 0.000000e+00 : f32
    %24 = vector.broadcast %cst_20 : f32 to vector<2x32xf32>
    %25 = arith.maximumf %23, %24 : vector<2x32xf32>
    %26 = arith.truncf %25 : vector<2x32xf32> to vector<2x32xbf16>
    %c0_21 = arith.constant 0 : index
    %c0_22 = arith.constant 0 : index
    %27 = vector.load %arg8[%c0_21, %c0_22] : memref<32x128xbf16, #tpu.memory_space<vmem>>, vector<32x128xbf16>
    %cst_23 = arith.constant dense<0.000000e+00> : vector<2x128xf32>
    %28 = tpu.matmul %26, %27, %cst_23 {dimension_numbers = #tpu.dot_dimension_numbers<[1], [0], [0], [1], [0, 0, 1, 1], [], []>} : vector<2x32xbf16>, vector<32x128xbf16>, vector<2x128xf32> -> vector<2x128xf32>
    %c0_24 = arith.constant 0 : index
    %c0_25 = arith.constant 0 : index
    %29 = vector.load %arg9[%c0_24, %c0_25] : memref<1x128xf32, #tpu.memory_space<vmem>>, vector<1x128xf32>
    %30 = vector.broadcast %29 : vector<1x128xf32> to vector<2x128xf32>
    %31 = arith.addf %28, %30 : vector<2x128xf32>
    %cst_26 = arith.constant dense<0xFF800000> : vector<2xf32>
    %32 = vector.multi_reduction <maximumf>, %31, %cst_26 [1] : vector<2x128xf32> to vector<2xf32>
    %33 = vector.shape_cast %32 : vector<2xf32> to vector<2x1xf32>
    %34 = vector.broadcast %33 : vector<2x1xf32> to vector<2x128xf32>
    %35 = arith.subf %31, %34 : vector<2x128xf32>
    %36 = math.exp %35 : vector<2x128xf32>
    %cst_27 = arith.constant dense<0.000000e+00> : vector<2xf32>
    %37 = vector.multi_reduction <add>, %36, %cst_27 [1] : vector<2x128xf32> to vector<2xf32>
    %38 = vector.shape_cast %37 : vector<2xf32> to vector<2x1xf32>
    %39 = math.log %38 : vector<2x1xf32>
    %40 = vector.broadcast %39 : vector<2x1xf32> to vector<2x128xf32>
    %41 = arith.subf %35, %40 : vector<2x128xf32>
    %c0_28 = arith.constant 0 : index
    %c0_29 = arith.constant 0 : index
    %42 = vector.load %arg10[%c0_28, %c0_29] : memref<2x128xf32, #tpu.memory_space<vmem>>, vector<2x128xf32>
    tpu.vector_store %arg10[%c0_28, %c0_29], %41 {strides = array<i32>} : memref<2x128xf32, #tpu.memory_space<vmem>>, vector<2x128xf32>,
    return
  }
  func.func @transform_0(%arg0: i32) -> (i32, i32, i32) {
    %c0_i32 = arith.constant 0 : i32
    %c0_i32_0 = arith.constant 0 : i32
    %c0_i32_1 = arith.constant 0 : i32
    return %arg0, %c0_i32, %c0_i32_0 : i32, i32, i32
  }
  func.func @transform_1(%arg0: i32) -> (i32, i32, i32) {
    %c0_i32 = arith.constant 0 : i32
    %c0_i32_0 = arith.constant 0 : i32
    %c0_i32_1 = arith.constant 0 : i32
    return %arg0, %c0_i32, %c0_i32_0 : i32, i32, i32
  }
  func.func @transform_2(%arg0: i32) -> (i32, i32) {
    %c0_i32 = arith.constant 0 : i32
    %c0_i32_0 = arith.constant 0 : i32
    %c0_i32_1 = arith.constant 0 : i32
    return %c0_i32, %c0_i32_0 : i32, i32
  }
  func.func @transform_3(%arg0: i32) -> (i32, i32) {
    %c0_i32 = arith.constant 0 : i32
    %c0_i32_0 = arith.constant 0 : i32
    %c0_i32_1 = arith.constant 0 : i32
    return %c0_i32, %c0_i32_0 : i32, i32
  }
  func.func @transform_4(%arg0: i32) -> (i32, i32) {
    %c0_i32 = arith.constant 0 : i32
    %c0_i32_0 = arith.constant 0 : i32
    %c0_i32_1 = arith.constant 0 : i32
    return %c0_i32, %c0_i32_0 : i32, i32
  }
  func.func @transform_5(%arg0: i32) -> (i32, i32) {
    %c0_i32 = arith.constant 0 : i32
    %c0_i32_0 = arith.constant 0 : i32
    %c0_i32_1 = arith.constant 0 : i32
    return %c0_i32, %c0_i32_0 : i32, i32
  }
  func.func @transform_6(%arg0: i32) -> (i32, i32) {
    %c0_i32 = arith.constant 0 : i32
    %c0_i32_0 = arith.constant 0 : i32
    %c0_i32_1 = arith.constant 0 : i32
    return %c0_i32, %c0_i32_0 : i32, i32
  }
  func.func @transform_7(%arg0: i32) -> (i32, i32) {
    %c0_i32 = arith.constant 0 : i32
    %c0_i32_0 = arith.constant 0 : i32
    %c0_i32_1 = arith.constant 0 : i32
    return %c0_i32, %c0_i32_0 : i32, i32
  }
  func.func @transform_8(%arg0: i32) -> (i32, i32) {
    %c0_i32 = arith.constant 0 : i32
    %c0_i32_0 = arith.constant 0 : i32
    %c0_i32_1 = arith.constant 0 : i32
    return %c0_i32, %c0_i32_0 : i32, i32
  }
  func.func @transform_9(%arg0: i32) -> (i32, i32) {
    %c0_i32 = arith.constant 0 : i32
    %c0_i32_0 = arith.constant 0 : i32
    return %arg0, %c0_i32 : i32, i32
  }
}

</mosaic_0001>

<llo_original>
// kernel: tpu_custom_call.1
$region0: #{tpu_custom_call.1}
  #allocation0 [shape = 'u32[]', space=smem, size = 0x4, offset = 0x4, fixed_abs, tag = 'smem constant byte address 0x4 - core index']
  #allocation1 [shape = 'u32[72,128]{1,0:T(1,128)}', space=vmem, size = 0x9000, scoped, tag = 'internal scratch']
  %s0 = inlined_call_operand.hbm [shape: bf16[2,16,32], index: 0, kind: input, shape index: {}]
  %s1 = inlined_call_operand.hbm [shape: bf16[2,16,32], index: 1, kind: input, shape index: {}]
  %s2 = inlined_call_operand.hbm [shape: bf16[32,32], index: 2, kind: input, shape index: {}]
  %s3 = inlined_call_operand.hbm [shape: bf16[32,32], index: 3, kind: input, shape index: {}]
  %s4 = inlined_call_operand.vmem [shape: f32[1,32], index: 4, kind: input, shape index: {}]
  %s5 = inlined_call_operand.hbm [shape: bf16[32,32], index: 5, kind: input, shape index: {}]
  %s6 = inlined_call_operand.vmem [shape: f32[1,32], index: 6, kind: input, shape index: {}]
  %s7 = inlined_call_operand.hbm [shape: bf16[32,128], index: 7, kind: input, shape index: {}]
  %s8 = inlined_call_operand.vmem [shape: f32[1,128], index: 8, kind: input, shape index: {}]
  %s9 = inlined_call_operand.hbm [shape: f32[2,128], index: 9, kind: output, shape index: {}]
  %s10 = sld [smem:[#allocation0]]
  $region70: #{tpu_custom_call.1} parent=0
    _
  %s12 = ssub.s32 1, %s10
  %s13 = scalar_select 0, %s12, %s10
  $region1: #{tpu_custom_call.1} parent=0
    #allocation2 [shape = 'u8[8192]{0}', space=vmem, size = 0x2000, scoped, tag = 'input window, operand 0, single buffered']
    #allocation3 [shape = 's32[1]{0}', space=sflag, size = 0x4, scoped, tag = 'scoped memory for tpu_custom_call.1']
    #allocation4 [shape = 's32[1]{0}', space=sflag, size = 0x4, scoped, tag = 'scoped memory for tpu_custom_call.1']
    #allocation5 [shape = 'u8[8192]{0}', space=vmem, size = 0x2000, scoped, tag = 'input window, operand 1, single buffered']
    #allocation6 [shape = 's32[1]{0}', space=sflag, size = 0x4, scoped, tag = 'scoped memory for tpu_custom_call.1']
    #allocation7 [shape = 'u8[8192]{0}', space=vmem, size = 0x2000, scoped, tag = 'input window, operand 2, single buffered']
    #allocation8 [shape = 'u8[8192]{0}', space=vmem, size = 0x2000, scoped, tag = 'input window, operand 3, single buffered']
    #allocation9 [shape = 's32[1]{0}', space=sflag, size = 0x4, scoped, tag = 'scoped memory for tpu_custom_call.1']
    #allocation10 [shape = 'u8[8192]{0}', space=vmem, size = 0x2000, scoped, tag = 'input window, operand 5, single buffered']
    #allocation11 [shape = 'u8[8192]{0}', space=vmem, size = 0x2000, scoped, tag = 'input window, operand 7, single buffered']
    #allocation12 [shape = 's32[1]{0}', space=sflag, size = 0x4, scoped, tag = 'scoped memory for tpu_custom_call.1']
    #allocation13 [shape = 'u8[1024]{0}', space=vmem, size = 0x400, scoped, tag = 'output window, operand 0, single buffered']
    %14 = vsyncpa [#allocation3], 0
    %15 = vsyncpa [#allocation6], 0
    %16 = vsyncpa [#allocation9], 0
    %17 = vsyncpa [#allocation12], 0
    %18 = vsyncpa [#allocation4], 0
    // Predicated region
    $region2: #{tpu_custom_call.1} parent=1 // pred_check
      _
    $region3: #{tpu_custom_call.1} parent=1 // pred_check_branch
      %20 = sbr.rel (0) target = $region5
    $region4: #{tpu_custom_call.1} parent=1 // pred_region
      %22 = vsyncadd [#allocation3], 0
      %s23 = sshll.u32 %s0, 4
      %s24 = int_to_ptr.hbm [resolvable:$true] %s23
      %s25 = sshll.u32 [#allocation2], 4
      %s26 = int_to_ptr.vmem [resolvable:$true] %s25
      %31 = dma.hbm_to_vmem [thread:$0]  %s24, 256, %s26, [#allocation3], 64, 64, 4
    $region5: #{tpu_custom_call.1} parent=1 // pred_fallthru
      _
    // Predicated region
    $region6: #{tpu_custom_call.1} parent=1 // pred_check
      _
    $region7: #{tpu_custom_call.1} parent=1 // pred_check_branch
      %33 = sbr.rel (0) target = $region9
    $region8: #{tpu_custom_call.1} parent=1 // pred_region
      %35 = vsyncadd [#allocation6], 0
      %s36 = sshll.u32 %s1, 4
      %s37 = int_to_ptr.hbm [resolvable:$true] %s36
      %s38 = sshll.u32 [#allocation5], 4
      %s39 = int_to_ptr.vmem [resolvable:$true] %s38
      %44 = dma.hbm_to_vmem [thread:$0]  %s37, 256, %s39, [#allocation6], 64, 64, 4
    $region9: #{tpu_custom_call.1} parent=1 // pred_fallthru
      _
    // Predicated region
    $region10: #{tpu_custom_call.1} parent=1 // pred_check
      _
    $region11: #{tpu_custom_call.1} parent=1 // pred_check_branch
      %46 = sbr.rel (0) target = $region13
    $region12: #{tpu_custom_call.1} parent=1 // pred_region
      %48 = vsyncadd [#allocation6], 0
      %s49 = sshll.u32 %s2, 4
      %s50 = int_to_ptr.hbm [resolvable:$true] %s49
      %s51 = sshll.u32 [#allocation7], 4
      %s52 = int_to_ptr.vmem [resolvable:$true] %s51
      %57 = dma.hbm_to_vmem [thread:$0]  %s50, 256, %s52, [#allocation6], 64, 64, 4
    $region13: #{tpu_custom_call.1} parent=1 // pred_fallthru
      _
    // Predicated region
    $region14: #{tpu_custom_call.1} parent=1 // pred_check
      _
    $region15: #{tpu_custom_call.1} parent=1 // pred_check_branch
      %59 = sbr.rel (0) target = $region17
    $region16: #{tpu_custom_call.1} parent=1 // pred_region
      %61 = vsyncadd [#allocation9], 0
      %s62 = sshll.u32 %s3, 4
      %s63 = int_to_ptr.hbm [resolvable:$true] %s62
      %s64 = sshll.u32 [#allocation8], 4
      %s65 = int_to_ptr.vmem [resolvable:$true] %s64
      %70 = dma.hbm_to_vmem [thread:$0]  %s63, 256, %s65, [#allocation9], 64, 64, 4
    $region17: #{tpu_custom_call.1} parent=1 // pred_fallthru
      _
    // Predicated region
    $region18: #{tpu_custom_call.1} parent=1 // pred_check
      _
    $region19: #{tpu_custom_call.1} parent=1 // pred_check_branch
      %72 = sbr.rel (0) target = $region21
    $region20: #{tpu_custom_call.1} parent=1 // pred_region
      _
    $region21: #{tpu_custom_call.1} parent=1 // pred_fallthru
      _
    // Predicated region
    $region22: #{tpu_custom_call.1} parent=1 // pred_check
      _
    $region23: #{tpu_custom_call.1} parent=1 // pred_check_branch
      %74 = sbr.rel (0) target = $region25
    $region24: #{tpu_custom_call.1} parent=1 // pred_region
      %76 = vsyncadd [#allocation9], 0
      %s77 = sshll.u32 %s5, 4
      %s78 = int_to_ptr.hbm [resolvable:$true] %s77
      %s79 = sshll.u32 [#allocation10], 4
      %s80 = int_to_ptr.vmem [resolvable:$true] %s79
      %85 = dma.hbm_to_vmem [thread:$0]  %s78, 256, %s80, [#allocation9], 64, 64, 4
    $region25: #{tpu_custom_call.1} parent=1 // pred_fallthru
      _
    // Predicated region
    $region26: #{tpu_custom_call.1} parent=1 // pred_check
      _
    $region27: #{tpu_custom_call.1} parent=1 // pred_check_branch
      %87 = sbr.rel (0) target = $region29
    $region28: #{tpu_custom_call.1} parent=1 // pred_region
      _
    $region29: #{tpu_custom_call.1} parent=1 // pred_fallthru
      _
    // Predicated region
    $region30: #{tpu_custom_call.1} parent=1 // pred_check
      _
    $region31: #{tpu_custom_call.1} parent=1 // pred_check_branch
      %89 = sbr.rel (0) target = $region33
    $region32: #{tpu_custom_call.1} parent=1 // pred_region
      %91 = vsyncadd [#allocation12], 0
      %s92 = sshll.u32 %s7, 4
      %s93 = int_to_ptr.hbm [resolvable:$true] %s92
      %s94 = sshll.u32 [#allocation11], 4
      %s95 = int_to_ptr.vmem [resolvable:$true] %s94
      %100 = dma.hbm_to_vmem [thread:$0]  %s93, 256, %s95, [#allocation12], 64, 64, 4
    $region33: #{tpu_custom_call.1} parent=1 // pred_fallthru
      _
    // Predicated region
    $region34: #{tpu_custom_call.1} parent=1 // pred_check
      _
    $region35: #{tpu_custom_call.1} parent=1 // pred_check_branch
      %102 = sbr.rel (0) target = $region37
    $region36: #{tpu_custom_call.1} parent=1 // pred_region
      _
    $region37: #{tpu_custom_call.1} parent=1 // pred_fallthru
      _
    // Predicated region
    $region38: #{tpu_custom_call.1} parent=1 // pred_check
      _
    $region39: #{tpu_custom_call.1} parent=1 // pred_check_branch
      %104 = sbr.rel (0) target = $region41
    $region40: #{tpu_custom_call.1} parent=1 // pred_region
      %106 = dma.done [#allocation3], 256
    $region41: #{tpu_custom_call.1} parent=1 // pred_fallthru
      _
    // Predicated region
    $region42: #{tpu_custom_call.1} parent=1 // pred_check
      _
    $region43: #{tpu_custom_call.1} parent=1 // pred_check_branch
      %108 = sbr.rel (0) target = $region45
    $region44: #{tpu_custom_call.1} parent=1 // pred_region
      %110 = dma.done [#allocation6], 256
    $region45: #{tpu_custom_call.1} parent=1 // pred_fallthru
      _
    // Predicated region
    $region46: #{tpu_custom_call.1} parent=1 // pred_check
      _
    $region47: #{tpu_custom_call.1} parent=1 // pred_check_branch
      %112 = sbr.rel (0) target = $region49
    $region48: #{tpu_custom_call.1} parent=1 // pred_region
      %114 = dma.done [#allocation6], 256
    $region49: #{tpu_custom_call.1} parent=1 // pred_fallthru
      _
    // Predicated region
    $region50: #{tpu_custom_call.1} parent=1 // pred_check
      _
    $region51: #{tpu_custom_call.1} parent=1 // pred_check_branch
      %116 = sbr.rel (0) target = $region53
    $region52: #{tpu_custom_call.1} parent=1 // pred_region
      %118 = dma.done [#allocation9], 256
    $region53: #{tpu_custom_call.1} parent=1 // pred_fallthru
      _
    // Predicated region
    $region54: #{tpu_custom_call.1} parent=1 // pred_check
      _
    $region55: #{tpu_custom_call.1} parent=1 // pred_check_branch
      %120 = sbr.rel (0) target = $region57
    $region56: #{tpu_custom_call.1} parent=1 // pred_region
      %122 = dma.done [#allocation9], 256
    $region57: #{tpu_custom_call.1} parent=1 // pred_fallthru
      _
    // Predicated region
    $region58: #{tpu_custom_call.1} parent=1 // pred_check
      _
    $region59: #{tpu_custom_call.1} parent=1 // pred_check_branch
      %124 = sbr.rel (0) target = $region61
    $region60: #{tpu_custom_call.1} parent=1 // pred_region
      %126 = dma.done [#allocation12], 256
    $region61: #{tpu_custom_call.1} parent=1 // pred_fallthru
      _
    %v128 = vld [vmem:[#allocation2] sm:$0xf]
    %v129 = vld [vmem:[#allocation2 + $0x4] sm:$0xf]
    %v130 = vld [vmem:[#allocation2 + $0x8] sm:$0xf]
    %v131 = vld [vmem:[#allocation2 + $0xc] sm:$0xf]
    %v132 = vunpack.c.l.bf16 %v128
    %v133 = vunpack.c.l.bf16 %v129
    %v134 = vunpack.c.l.bf16 %v130
    %v135 = vunpack.c.l.bf16 %v131
    %v136 = vld [vmem:[#allocation5] sm:$0xf]
    %v137 = vld [vmem:[#allocation5 + $0x4] sm:$0xf]
    %v138 = vld [vmem:[#allocation5 + $0x8] sm:$0xf]
    %v139 = vld [vmem:[#allocation5 + $0xc] sm:$0xf]
    %v140 = vunpack.c.l.bf16 %v136
    %v141 = vunpack.c.l.bf16 %v137
    %v142 = vunpack.c.l.bf16 %v138
    %v143 = vunpack.c.l.bf16 %v139
    %vm144 = vcmask 261120
    %v145 = vsel %vm144, %v132, -inf
    %v146 = vsel %vm144, %v133, -inf
    %v147 = vmax.f32 %v145, %v146
    %v148 = vrot.slane %v147, 4
    %v149 = vmax.f32 %v147, %v148
    %v150 = vrot.slane %v149, 2
    %v151 = vmax.f32 %v149, %v150
    %v152 = vrot.slane %v151, 1
    %v153 = vmax.f32 %v151, %v152
    %v154 = vsel %vm144, %v134, -inf
    %v155 = vsel %vm144, %v135, -inf
    %v156 = vmax.f32 %v154, %v155
    %v157 = vrot.slane %v156, 4
    %v158 = vmax.f32 %v156, %v157
    %v159 = vrot.slane %v158, 2
    %v160 = vmax.f32 %v158, %v159
    %v161 = vrot.slane %v160, 1
    %v162 = vmax.f32 %v160, %v161
    %v163 = vsel %vm144, %v140, -inf
    %v164 = vsel %vm144, %v141, -inf
    %v165 = vmax.f32 %v163, %v164
    %v166 = vrot.slane %v165, 4
    %v167 = vmax.f32 %v165, %v166
    %v168 = vrot.slane %v167, 2
    %v169 = vmax.f32 %v167, %v168
    %v170 = vrot.slane %v169, 1
    %v171 = vmax.f32 %v169, %v170
    %v172 = vsel %vm144, %v142, -inf
    %v173 = vsel %vm144, %v143, -inf
    %v174 = vmax.f32 %v172, %v173
    %v175 = vrot.slane %v174, 4
    %v176 = vmax.f32 %v174, %v175
    %v177 = vrot.slane %v176, 2
    %v178 = vmax.f32 %v176, %v177
    %v179 = vrot.slane %v178, 1
    %v180 = vmax.f32 %v178, %v179
    %v181 = vpack.c.bf16 %v153, %v153
    %v182 = vpack.c.bf16 %v162, %v162
    %v183 = vpack.c.bf16 %v171, %v171
    %v184 = vpack.c.bf16 %v180, %v180
    %v185 = vld [vmem:[#allocation7] sm:$0xf]
    %v186 = vld [vmem:[#allocation7 + $0x4] sm:$0xf]
    %v187 = vld [vmem:[#allocation7 + $0x8] sm:$0xf]
    %v188 = vld [vmem:[#allocation7 + $0xc] sm:$0xf]
    %v189 = vld [vmem:[#allocation8] sm:$0xf]
    %v190 = vld [vmem:[#allocation8 + $0x4] sm:$0xf]
    %v191 = vld [vmem:[#allocation8 + $0x8] sm:$0xf]
    %v192 = vld [vmem:[#allocation8 + $0xc] sm:$0xf]
    %v195 = vunpack.c.l.b16 %v183
    %v196 = vunpack.c.l.b16 %v184
    %vm197 = vcmask 1041409
    %v198 = vsel %vm197, %v196, %v195
    %v199 = vpack.c.b16 %v198, %v198
    %v204 = vunpack.c.l.b16 %v189
    %v205 = vunpack.c.l.b16 %v190
    %v206 = vunpack.c.l.b16 %v191
    %v207 = vunpack.c.l.b16 %v192
    %v208 = vpack.c.b16 %v205, %v204
    %v209 = vpack.c.b16 %v207, %v206
    %v213 = vsel %vm144, %v199, 0
    %215 = vmatpush.bf16.msra.mxu0 0
    %216 = vmatpush.bf16.msra.mxu0 0
    %217 = vmatpush.bf16.msra.mxu0 0
    %218 = vmatpush.bf16.msra.mxu0 0
    %219 = vmatpush.bf16.msra.mxu0 0
    %220 = vmatpush.bf16.msra.mxu0 0
    %221 = vmatpush.bf16.msra.mxu0 %v209
    %222 = vmatpush.bf16.msra.mxu0 %v208
    %223 = vmatmul.bf16.gmra.mxu0 %v213
    %v224 = vpop.f32.mrf.mxu0
    %v225 = vadd.f32 0.0, %v224
    %v226 = vpop.f32.mrf.mxu0
    %227 = vdwg.mxu0
    %v230 = vunpack.c.l.b16 %v181
    %v231 = vunpack.c.l.b16 %v182
    %v232 = vsel %vm197, %v231, %v230
    %v233 = vpack.c.b16 %v232, %v232
    %v238 = vunpack.c.l.b16 %v185
    %v239 = vunpack.c.l.b16 %v186
    %v240 = vunpack.c.l.b16 %v187
    %v241 = vunpack.c.l.b16 %v188
    %v242 = vpack.c.b16 %v239, %v238
    %v243 = vpack.c.b16 %v241, %v240
    %v247 = vsel %vm144, %v233, 0
    %249 = vmatpush.bf16.msra.mxu0 0
    %250 = vmatpush.bf16.msra.mxu0 0
    %251 = vmatpush.bf16.msra.mxu0 0
    %252 = vmatpush.bf16.msra.mxu0 0
    %253 = vmatpush.bf16.msra.mxu0 0
    %254 = vmatpush.bf16.msra.mxu0 0
    %255 = vmatpush.bf16.msra.mxu0 %v243
    %256 = vmatpush.bf16.msra.mxu0 %v242
    %257 = vmatmul.bf16.gmra.mxu0 %v247
    %v258 = vpop.f32.mrf.mxu0
    %v259 = vadd.f32 %v225, %v258
    %v260 = vpop.f32.mrf.mxu0
    %261 = vdwg.mxu0
    %v262 = vld [vmem:[%s4] sm:$0x1]
    %v264 = vperm.slane %v262, 0
    %v266 = vadd.f32 %v259, %v264
    %v267 = vmax.f32 %v266, 0.0
    %v268 = vpack.c.bf16 %v267, %v267
    %v269 = vld [vmem:[#allocation10] sm:$0xf]
    %v270 = vld [vmem:[#allocation10 + $0x4] sm:$0xf]
    %v271 = vld [vmem:[#allocation10 + $0x8] sm:$0xf]
    %v272 = vld [vmem:[#allocation10 + $0xc] sm:$0xf]
    %v273 = vld [vmem:[%s6] sm:$0x1]
    %v275 = vperm.slane %v273, 0
    %v281 = vunpack.c.l.b16 %v269
    %v282 = vunpack.c.l.b16 %v270
    %v283 = vunpack.c.l.b16 %v271
    %v284 = vunpack.c.l.b16 %v272
    %v285 = vpack.c.b16 %v282, %v281
    %v286 = vpack.c.b16 %v284, %v283
    %v290 = vsel %vm144, %v268, 0
    %292 = vmatpush.bf16.msra.mxu0 0
    %293 = vmatpush.bf16.msra.mxu0 0
    %294 = vmatpush.bf16.msra.mxu0 0
    %295 = vmatpush.bf16.msra.mxu0 0
    %296 = vmatpush.bf16.msra.mxu0 0
    %297 = vmatpush.bf16.msra.mxu0 0
    %298 = vmatpush.bf16.msra.mxu0 %v286
    %299 = vmatpush.bf16.msra.mxu0 %v285
    %300 = vmatmul.bf16.gmra.mxu0 %v290
    %v301 = vpop.f32.mrf.mxu0
    %v302 = vadd.f32 %v275, %v301
    %v303 = vpop.f32.mrf.mxu0
    %304 = vdwg.mxu0
    %v305 = vmax.f32 %v302, 0.0
    %v306 = vpack.c.bf16 %v305, %v305
    %v307 = vld [vmem:[#allocation11] sm:$0xf]
    %v308 = vld [vmem:[#allocation11 + $0x4] sm:$0xf]
    %v309 = vld [vmem:[#allocation11 + $0x8] sm:$0xf]
    %v310 = vld [vmem:[#allocation11 + $0xc] sm:$0xf]
    %v311 = vld [vmem:[%s8] sm:$0x1]
    %v313 = vperm.slane %v311, 0
    %v319 = vunpack.c.l.b16 %v307
    %v320 = vunpack.c.l.b16 %v308
    %v321 = vunpack.c.l.b16 %v309
    %v322 = vunpack.c.l.b16 %v310
    %v323 = vpack.c.b16 %v320, %v319
    %v324 = vpack.c.b16 %v322, %v321
    %v328 = vsel %vm144, %v306, 0
    %330 = vmatpush.bf16.msra.mxu0 0
    %331 = vmatpush.bf16.msra.mxu0 0
    %332 = vmatpush.bf16.msra.mxu0 0
    %333 = vmatpush.bf16.msra.mxu0 0
    %334 = vmatpush.bf16.msra.mxu0 0
    %335 = vmatpush.bf16.msra.mxu0 0
    %336 = vmatpush.bf16.msra.mxu0 %v324
    %337 = vmatpush.bf16.msra.mxu0 %v323
    %338 = vmatmul.bf16.gmra.mxu0 %v328
    %v339 = vpop.f32.mrf.mxu0
    %v340 = vadd.f32 %v313, %v339
    %v341 = vpop.f32.mrf.mxu0
    %342 = vdwg.mxu0
    %vm343 = vcmask 1041408
    %v344 = vsel %vm343, %v340, -inf
    %345 = vmax.xlane.f32.xlu0 %v344
    %v346 = vpop.xlane.xlu0 %345
    %v347 = vsub.f32 %v340, %v346
    %v348 = vmul.f32 %v347, 1.442695
    %v349 = vpow.pop %v348
    %v350 = vsel %vm343, %v349, 0.0
    %351 = vadd.xlane.f32.xlu0 %v350
    %v352 = vpop.xlane.xlu0 %351
    %v353 = vlog2.pop %v352
    %v354 = vmul.f32 %v353, 0.6931472
    %v355 = vsub.f32 %v347, %v354
    %356 = vst [vmem:[#allocation13] sm:$0x3] %v355
    // Predicated region
    $region62: #{tpu_custom_call.1} parent=1 // pred_check
      _
    $region63: #{tpu_custom_call.1} parent=1 // pred_check_branch
      %358 = sbr.rel (0) target = $region65
    $region64: #{tpu_custom_call.1} parent=1 // pred_region
      %360 = vsyncadd [#allocation4], 0
      %s362 = sshll.u32 [#allocation13], 4
      %s363 = int_to_ptr.vmem [resolvable:$true] %s362
      %s364 = sshll.u32 %s9, 4
      %s365 = int_to_ptr.hbm [resolvable:$true] %s364
      %367 = dma.vmem_to_hbm [thread:$0]  %s363, 32, %s365, [#allocation4]
    $region65: #{tpu_custom_call.1} parent=1 // pred_fallthru
      _
    // Predicated region
    $region66: #{tpu_custom_call.1} parent=1 // pred_check
      _
    $region67: #{tpu_custom_call.1} parent=1 // pred_check_branch
      %369 = sbr.rel (0) target = $region69
    $region68: #{tpu_custom_call.1} parent=1 // pred_region
      %371 = dma.done [#allocation4], 32
    $region69: #{tpu_custom_call.1} parent=1 // pred_fallthru
      _
    %372 = vsyncpa [#allocation3], 1
    %373 = vsyncpa [#allocation6], 1
    %374 = vsyncpa [#allocation9], 1
    %375 = vsyncpa [#allocation12], 1
    %376 = vsyncpa [#allocation4], 1

</llo_original>
